<compile_context>
chip_gen: v7x
topology: tpu7x:2x2x1
jax: 0.10.0
libtpu: 0.0.40
codegen_flags: <defaults>
</compile_context>

<pallas_src>
import functools

import jax
import jax.numpy as jnp
from jax import lax
from jax.experimental import pallas as pl
from jax.experimental.pallas import tpu as pltpu


_QDEPTH = 16                  # in-flight row DMAs for the HBM-gather path
_TOKEN_TILE_CAP = 2048        # max tokens per grid step
_HEADROOM_BYTES = 12 * 2**20  # compiler-internal scratch headroom
_RESERVE_BYTES = 20 * 2**20   # headroom + room for out/ts double buffers


def _round_up(x, m):
    return (x + m - 1) // m * m


def _vmem_capacity_bytes():
    """Per-core VMEM capacity (128 MiB on v5e/v6e, 64 MiB on v7x)."""
    try:
        cap = int(pltpu.get_tpu_info().vmem_capacity_bytes)
        if cap > 0:
            return cap
    except Exception:
        pass
    return 64 * 2**20  # conservative fallback (v7x per-TC)


# ---------------- fast path: weight table resident in VMEM -------------------

def _emb_kernel_vmem_table(ids_ref, n_ref, w_ref, ts_ref, out_ref):
    # ids_ref: SMEM (n_pad,) int32 token ids (scalar prefetch)
    # n_ref:   SMEM (1,) int32 true token count (unused on this path)
    # w_ref:   VMEM (V, D) full embedding table (single-buffered, fetched once)
    # ts_ref:  VMEM (TB, 1) per-token multiplier (mask row value * scale)
    # out_ref: VMEM (TB, D) output tile
    del n_ref
    tb = out_ref.shape[0]
    base = pl.program_id(0) * tb
    out_dtype = out_ref.dtype

    def gather_row(j, carry):
        tok = ids_ref[base + j]
        row = w_ref[pl.ds(tok, 1), :].astype(jnp.float32)
        # Fused per-row multiply: the VPU mul co-issues under the ld/st-bound
        # gather, so no extra full-(TB, D) pass is needed.
        out_ref[pl.ds(j, 1), :] = (row * ts_ref[pl.ds(j, 1), :]).astype(out_dtype)
        return carry

    lax.fori_loop(0, tb, gather_row, 0, unroll=8)


# ---------------- general path: weight stays in HBM, manual DMA gather -------

def _emb_kernel_hbm_gather(qdepth, ids_ref, n_ref, w_hbm, ts_ref, out_ref, sems):
    # w_hbm: HBM (V, D) ref (memory_space=pl.ANY)
    # sems:  DMA semaphores (qdepth,) -- rows land DIRECTLY in out_ref
    tb = out_ref.shape[0]
    base = pl.program_id(0) * tb
    # Number of real (non-padded) tokens in this tile; padded rows get no DMA.
    valid = jnp.maximum(jnp.minimum(tb, n_ref[0] - base), 0)

    def start_fetch(j, slot):
        tok = ids_ref[base + j]
        pltpu.make_async_copy(
            w_hbm.at[pl.ds(tok, 1), :], out_ref.at[pl.ds(j, 1), :],
            sems.at[slot]).start()

    # Prime the ring: up to qdepth row fetches in flight.
    for j in range(qdepth):
        @pl.when(j < valid)
        def _():
            start_fetch(j, j)

    def body(j, carry):
        slot = j % qdepth
        # NOTE: the src slice of this wait descriptor (row 0) differs from the
        # one that was started (row tok); only the transfer SIZE matters (the
        # semaphore counts bytes). Do not change the slice shapes here or the
        # ring silently desynchronizes.
        pltpu.make_async_copy(
            w_hbm.at[pl.ds(0, 1), :], out_ref.at[pl.ds(j, 1), :],
            sems.at[slot]).wait()

        @pl.when(j + qdepth < valid)
        def _():
            start_fetch(j + qdepth, slot)

        return carry

    lax.fori_loop(0, valid, body, 0)

    # One tile-wide pass applies mask*scale. Rows >= valid were never written
    # (stale VMEM) but are multiplied by ts == 0 and sliced off by the wrapper.
    out_ref[...] = (out_ref[...].astype(ts_ref.dtype) * ts_ref[...]).astype(out_ref.dtype)


# ---------------- wrapper -----------------------------------------------------

def embedding_dropout(words, weight, row_mask, scale=None, *,
                      token_tile_cap=_TOKEN_TILE_CAP, force_hbm_gather=False):
    """EmbeddingDropout forward.

    words:    (B, T) integer token ids
    weight:   (V, D) embedding table
    row_mask: (V,)   per-vocab-row dropout mask (bernoulli(1-p)/(1-p), or ones
                     when not training / dropout == 0)
    scale:    optional STATIC Python scalar, applied only if truthy
              (matches `if self.scale:` in the module).
    """
    B, T = words.shape
    V, D = weight.shape
    n = B * T
    itemsize = jnp.dtype(weight.dtype).itemsize
    table_bytes = V * D * itemsize

    # Clamp token ids for robustness (data-dependent addresses feed DMAs).
    flat_words = jnp.clip(words.reshape(n).astype(jnp.int32), 0, V - 1)

    # Per-token multiplier: dropout-mask value for that token's vocab row,
    # with the optional scale folded in once (torch truthiness: None/0 -> no-op).
    tok_scale = row_mask.astype(jnp.float32)[flat_words]
    if scale:
        tok_scale = tok_scale * jnp.float32(scale)

    vmem_cap = _vmem_capacity_bytes()
    use_vmem_table = (not force_hbm_gather) and (
        table_bytes <= vmem_cap - _RESERVE_BYTES)

    # Token tile: as large as the leftover VMEM allows (amortizes the ~0.35us
    # per-grid-step overhead), capped, and split so the grid has >= 2 steps
    # (keeps both v7x TensorCores busy; harmless elsewhere).
    bytes_per_tok = 2 * (D * itemsize + 4)   # double-buffered out row + ts row
    free_bytes = vmem_cap - _HEADROOM_BYTES - (table_bytes if use_vmem_table else 0)
    out_budget = max(min(free_bytes, 16 * 2**20), 0)
    tb_budget = max(out_budget // bytes_per_tok, 8)
    tb_split = _round_up(max((n + 1) // 2, 8), 8)
    tb = max(8, (min(token_tile_cap, tb_budget, tb_split) // 8) * 8)

    n_pad = _round_up(n, tb)
    grid = n_pad // tb
    if n_pad != n:
        pad = n_pad - n
        flat_words = jnp.concatenate([flat_words, jnp.zeros((pad,), jnp.int32)])
        tok_scale = jnp.concatenate([tok_scale, jnp.zeros((pad,), jnp.float32)])
    tok_scale = tok_scale.reshape(n_pad, 1)
    n_vec = jnp.array([n], jnp.int32)

    out_spec = pl.BlockSpec((tb, D), lambda t, ids, nn: (t, 0))
    ts_spec = pl.BlockSpec((tb, 1), lambda t, ids, nn: (t, 0))
    out_shape = jax.ShapeDtypeStruct((n_pad, D), weight.dtype)

    def _vmem_limit(est):
        return int(min(vmem_cap - _HEADROOM_BYTES,
                       max(32 * 2**20, est + 8 * 2**20)))

    def run_fast(table_mult):
        # table_mult == 1: explicitly single-buffer the resident table (its
        # block index is constant, so double buffering is pure VMEM waste).
        if table_mult == 1:
            w_spec = pl.BlockSpec((V, D), lambda t, ids, nn: (0, 0),
                                  pipeline_mode=pl.Buffered(1))
        else:
            w_spec = pl.BlockSpec((V, D), lambda t, ids, nn: (0, 0))
        est = table_mult * table_bytes + tb * bytes_per_tok
        grid_spec = pltpu.PrefetchScalarGridSpec(
            num_scalar_prefetch=2, grid=(grid,),
            in_specs=[w_spec, ts_spec], out_specs=out_spec)
        return pl.pallas_call(
            _emb_kernel_vmem_table,
            out_shape=out_shape, grid_spec=grid_spec,
            compiler_params=pltpu.CompilerParams(
                dimension_semantics=("parallel",),
                vmem_limit_bytes=_vmem_limit(est)),
        )(flat_words, n_vec, weight, tok_scale)

    def run_hbm():
        qd = int(min(_QDEPTH, tb))
        est = tb * bytes_per_tok
        grid_spec = pltpu.PrefetchScalarGridSpec(
            num_scalar_prefetch=2, grid=(grid,),
            in_specs=[pl.BlockSpec(memory_space=pl.ANY), ts_spec],
            out_specs=out_spec,
            scratch_shapes=[pltpu.SemaphoreType.DMA((qd,))])
        return pl.pallas_call(
            functools.partial(_emb_kernel_hbm_gather, qd),
            out_shape=out_shape, grid_spec=grid_spec,
            compiler_params=pltpu.CompilerParams(
                dimension_semantics=("parallel",),
                vmem_limit_bytes=_vmem_limit(est)),
        )(flat_words, n_vec, weight, tok_scale)

    if use_vmem_table:
        try:
            out = run_fast(1)
        except Exception:
            # pipeline_mode=pl.Buffered(1) not supported on this jax version:
            # fall back to default double-buffering if the table still fits,
            # otherwise to the HBM row-gather path.
            if 2 * table_bytes <= vmem_cap - _RESERVE_BYTES:
                out = run_fast(2)
            else:
                out = run_hbm()
    else:
        out = run_hbm()

    return out[:n].reshape(B, T, D)


if __name__ == "__main__":
    key = jax.random.PRNGKey(0)
    k_w, k_words, k_mask = jax.random.split(key, 3)

    VOCAB, EMB_DIM = 64, 128
    B, T = 2, 8
    dropout_p = 0.1
    padding_idx = 0
    training = True

    weight = jax.random.normal(k_w, (VOCAB, EMB_DIM), jnp.float32)
    weight = weight.at[padding_idx].set(0.0)   # nn.Embedding zeroes the padding row

    words = jax.random.randint(k_words, (B, T), 0, VOCAB, dtype=jnp.int32)

    # dropout_mask(x, (V, 1), p): bernoulli(1-p) / (1-p), one value per vocab row.
    # TODO(synk): mask sampling stays in the JAX wrapper (matches the module's
    # host-side dropout_mask); it is not generated inside the kernel.
    if training and dropout_p != 0.0:
        keep = jax.random.bernoulli(k_mask, 1.0 - dropout_p, (VOCAB,))
        row_mask = keep.astype(jnp.float32) / (1.0 - dropout_p)
    else:
        row_mask = jnp.ones((VOCAB,), jnp.float32)

    # TODO(synk): sub-32-bit (bf16/int8) tables could gather through a uint32
    # bitcast view for full-rate sublane loads; f32 path is exercised here.

    def reference(words, weight, row_mask, scale):
        masked_w = weight * row_mask[:, None]
        if scale:
            masked_w = scale * masked_w
        return masked_w[words]

    # Fast path: table resident in VMEM (single-buffered), fused mask multiply.
    out = jax.block_until_ready(embedding_dropout(words, weight, row_mask, scale=None))
    ref = reference(words, weight, row_mask, None)
    assert out.shape == (B, T, EMB_DIM), out.shape
    assert out.dtype == jnp.float32
    assert jnp.allclose(out, ref, atol=1e-6), float(jnp.max(jnp.abs(out - ref)))

    # Big-vocab path: rows DMA'd straight into the output tile, scale folded in.
    out2 = jax.block_until_ready(
        embedding_dropout(words, weight, row_mask, scale=2.0, force_hbm_gather=True))
    ref2 = reference(words, weight, row_mask, 2.0)
    assert jnp.allclose(out2, ref2, atol=1e-6), float(jnp.max(jnp.abs(out2 - ref2)))

    # Ragged token count (exercises the padded-tail DMA guard in the HBM path).
    words3 = jax.random.randint(k_words, (3, 5), 0, VOCAB, dtype=jnp.int32)
    out3 = jax.block_until_ready(
        embedding_dropout(words3, weight, row_mask, scale=None, force_hbm_gather=True))
    ref3 = reference(words3, weight, row_mask, None)
    assert out3.shape == (3, 5, EMB_DIM)
    assert jnp.allclose(out3, ref3, atol=1e-6), float(jnp.max(jnp.abs(out3 - ref3)))

    # scale=0.0 follows torch truthiness (`if self.scale:`) -> no scaling applied.
    out4 = jax.block_until_ready(embedding_dropout(words, weight, row_mask, scale=0.0))
    assert jnp.allclose(out4, ref, atol=1e-6)

    print("KERNEL_OK")
</pallas_src>

<mosaic_0001>
module attributes {stable_mosaic.version = 11 : i64} {
  func.func @_emb_kernel_vmem_table(%arg0: i32, %arg1: memref<16xi32, #tpu.memory_space<smem>>, %arg2: memref<1xi32, #tpu.memory_space<smem>>, %arg3: memref<64x128xf32, #tpu.memory_space<vmem>>, %arg4: memref<8x1xf32, #tpu.memory_space<vmem>>, %arg5: memref<8x128xf32, #tpu.memory_space<vmem>>) attributes {dimension_semantics = [#tpu.dimension_semantics<parallel>], iteration_bounds = array<i64: 2>, scalar_prefetch = 2 : i64, scratch_operands = 0 : i64, tpu.core_type = #tpu.core_type<tc>, window_params = [{pipeline_mode = #tpu.pipeline_mode<synchronous>, transform_indices = @transform_0, window_bounds = array<i64: 64, 128>}, {transform_indices = @transform_1, window_bounds = array<i64: 8, 1>}, {transform_indices = @transform_2, window_bounds = array<i64: 8, 128>}]} {
    %c8_i32 = arith.constant 8 : i32
    %0 = arith.muli %arg0, %c8_i32 : i32
    %c0_i32 = arith.constant 0 : i32
    %1 = arith.addi %0, %c0_i32 : i32
    %2 = arith.index_cast %1 : i32 to index
    %3 = memref.load %arg1[%2] : memref<16xi32, #tpu.memory_space<smem>>
    %4 = arith.index_cast %3 : i32 to index
    %c0 = arith.constant 0 : index
    %5 = vector.load %arg3[%4, %c0] : memref<64x128xf32, #tpu.memory_space<vmem>>, vector<1x128xf32>
    %6 = arith.index_cast %c0_i32 : i32 to index
    %c0_0 = arith.constant 0 : index
    %7 = vector.load %arg4[%6, %c0_0] : memref<8x1xf32, #tpu.memory_space<vmem>>, vector<1x1xf32>
    %8 = vector.broadcast %7 : vector<1x1xf32> to vector<1x128xf32>
    %9 = arith.mulf %5, %8 : vector<1x128xf32>
    %10 = arith.index_cast %c0_i32 : i32 to index
    %c0_1 = arith.constant 0 : index
    %11 = vector.load %arg5[%10, %c0_1] : memref<8x128xf32, #tpu.memory_space<vmem>>, vector<1x128xf32>
    tpu.vector_store %arg5[%10, %c0_1], %9 {strides = array<i32>} : memref<8x128xf32, #tpu.memory_space<vmem>>, vector<1x128xf32>,
    %c1_i32 = arith.constant 1 : i32
    %12 = arith.addi %0, %c1_i32 : i32
    %13 = arith.index_cast %12 : i32 to index
    %14 = memref.load %arg1[%13] : memref<16xi32, #tpu.memory_space<smem>>
    %15 = arith.index_cast %14 : i32 to index
    %c0_2 = arith.constant 0 : index
    %16 = vector.load %arg3[%15, %c0_2] : memref<64x128xf32, #tpu.memory_space<vmem>>, vector<1x128xf32>
    %17 = arith.index_cast %c1_i32 : i32 to index
    %c0_3 = arith.constant 0 : index
    %18 = vector.load %arg4[%17, %c0_3] : memref<8x1xf32, #tpu.memory_space<vmem>>, vector<1x1xf32>
    %19 = vector.broadcast %18 : vector<1x1xf32> to vector<1x128xf32>
    %20 = arith.mulf %16, %19 : vector<1x128xf32>
    %21 = arith.index_cast %c1_i32 : i32 to index
    %c0_4 = arith.constant 0 : index
    %22 = vector.load %arg5[%21, %c0_4] : memref<8x128xf32, #tpu.memory_space<vmem>>, vector<1x128xf32>
    tpu.vector_store %arg5[%21, %c0_4], %20 {strides = array<i32>} : memref<8x128xf32, #tpu.memory_space<vmem>>, vector<1x128xf32>,
    %c2_i32 = arith.constant 2 : i32
    %23 = arith.addi %0, %c2_i32 : i32
    %24 = arith.index_cast %23 : i32 to index
    %25 = memref.load %arg1[%24] : memref<16xi32, #tpu.memory_space<smem>>
    %26 = arith.index_cast %25 : i32 to index
    %c0_5 = arith.constant 0 : index
    %27 = vector.load %arg3[%26, %c0_5] : memref<64x128xf32, #tpu.memory_space<vmem>>, vector<1x128xf32>
    %28 = arith.index_cast %c2_i32 : i32 to index
    %c0_6 = arith.constant 0 : index
    %29 = vector.load %arg4[%28, %c0_6] : memref<8x1xf32, #tpu.memory_space<vmem>>, vector<1x1xf32>
    %30 = vector.broadcast %29 : vector<1x1xf32> to vector<1x128xf32>
    %31 = arith.mulf %27, %30 : vector<1x128xf32>
    %32 = arith.index_cast %c2_i32 : i32 to index
    %c0_7 = arith.constant 0 : index
    %33 = vector.load %arg5[%32, %c0_7] : memref<8x128xf32, #tpu.memory_space<vmem>>, vector<1x128xf32>
    tpu.vector_store %arg5[%32, %c0_7], %31 {strides = array<i32>} : memref<8x128xf32, #tpu.memory_space<vmem>>, vector<1x128xf32>,
    %c3_i32 = arith.constant 3 : i32
    %34 = arith.addi %0, %c3_i32 : i32
    %35 = arith.index_cast %34 : i32 to index
    %36 = memref.load %arg1[%35] : memref<16xi32, #tpu.memory_space<smem>>
    %37 = arith.index_cast %36 : i32 to index
    %c0_8 = arith.constant 0 : index
    %38 = vector.load %arg3[%37, %c0_8] : memref<64x128xf32, #tpu.memory_space<vmem>>, vector<1x128xf32>
    %39 = arith.index_cast %c3_i32 : i32 to index
    %c0_9 = arith.constant 0 : index
    %40 = vector.load %arg4[%39, %c0_9] : memref<8x1xf32, #tpu.memory_space<vmem>>, vector<1x1xf32>
    %41 = vector.broadcast %40 : vector<1x1xf32> to vector<1x128xf32>
    %42 = arith.mulf %38, %41 : vector<1x128xf32>
    %43 = arith.index_cast %c3_i32 : i32 to index
    %c0_10 = arith.constant 0 : index
    %44 = vector.load %arg5[%43, %c0_10] : memref<8x128xf32, #tpu.memory_space<vmem>>, vector<1x128xf32>
    tpu.vector_store %arg5[%43, %c0_10], %42 {strides = array<i32>} : memref<8x128xf32, #tpu.memory_space<vmem>>, vector<1x128xf32>,
    %c4_i32 = arith.constant 4 : i32
    %45 = arith.addi %0, %c4_i32 : i32
    %46 = arith.index_cast %45 : i32 to index
    %47 = memref.load %arg1[%46] : memref<16xi32, #tpu.memory_space<smem>>
    %48 = arith.index_cast %47 : i32 to index
    %c0_11 = arith.constant 0 : index
    %49 = vector.load %arg3[%48, %c0_11] : memref<64x128xf32, #tpu.memory_space<vmem>>, vector<1x128xf32>
    %50 = arith.index_cast %c4_i32 : i32 to index
    %c0_12 = arith.constant 0 : index
    %51 = vector.load %arg4[%50, %c0_12] : memref<8x1xf32, #tpu.memory_space<vmem>>, vector<1x1xf32>
    %52 = vector.broadcast %51 : vector<1x1xf32> to vector<1x128xf32>
    %53 = arith.mulf %49, %52 : vector<1x128xf32>
    %54 = arith.index_cast %c4_i32 : i32 to index
    %c0_13 = arith.constant 0 : index
    %55 = vector.load %arg5[%54, %c0_13] : memref<8x128xf32, #tpu.memory_space<vmem>>, vector<1x128xf32>
    tpu.vector_store %arg5[%54, %c0_13], %53 {strides = array<i32>} : memref<8x128xf32, #tpu.memory_space<vmem>>, vector<1x128xf32>,
    %c5_i32 = arith.constant 5 : i32
    %56 = arith.addi %0, %c5_i32 : i32
    %57 = arith.index_cast %56 : i32 to index
    %58 = memref.load %arg1[%57] : memref<16xi32, #tpu.memory_space<smem>>
    %59 = arith.index_cast %58 : i32 to index
    %c0_14 = arith.constant 0 : index
    %60 = vector.load %arg3[%59, %c0_14] : memref<64x128xf32, #tpu.memory_space<vmem>>, vector<1x128xf32>
    %61 = arith.index_cast %c5_i32 : i32 to index
    %c0_15 = arith.constant 0 : index
    %62 = vector.load %arg4[%61, %c0_15] : memref<8x1xf32, #tpu.memory_space<vmem>>, vector<1x1xf32>
    %63 = vector.broadcast %62 : vector<1x1xf32> to vector<1x128xf32>
    %64 = arith.mulf %60, %63 : vector<1x128xf32>
    %65 = arith.index_cast %c5_i32 : i32 to index
    %c0_16 = arith.constant 0 : index
    %66 = vector.load %arg5[%65, %c0_16] : memref<8x128xf32, #tpu.memory_space<vmem>>, vector<1x128xf32>
    tpu.vector_store %arg5[%65, %c0_16], %64 {strides = array<i32>} : memref<8x128xf32, #tpu.memory_space<vmem>>, vector<1x128xf32>,
    %c6_i32 = arith.constant 6 : i32
    %67 = arith.addi %0, %c6_i32 : i32
    %68 = arith.index_cast %67 : i32 to index
    %69 = memref.load %arg1[%68] : memref<16xi32, #tpu.memory_space<smem>>
    %70 = arith.index_cast %69 : i32 to index
    %c0_17 = arith.constant 0 : index
    %71 = vector.load %arg3[%70, %c0_17] : memref<64x128xf32, #tpu.memory_space<vmem>>, vector<1x128xf32>
    %72 = arith.index_cast %c6_i32 : i32 to index
    %c0_18 = arith.constant 0 : index
    %73 = vector.load %arg4[%72, %c0_18] : memref<8x1xf32, #tpu.memory_space<vmem>>, vector<1x1xf32>
    %74 = vector.broadcast %73 : vector<1x1xf32> to vector<1x128xf32>
    %75 = arith.mulf %71, %74 : vector<1x128xf32>
    %76 = arith.index_cast %c6_i32 : i32 to index
    %c0_19 = arith.constant 0 : index
    %77 = vector.load %arg5[%76, %c0_19] : memref<8x128xf32, #tpu.memory_space<vmem>>, vector<1x128xf32>
    tpu.vector_store %arg5[%76, %c0_19], %75 {strides = array<i32>} : memref<8x128xf32, #tpu.memory_space<vmem>>, vector<1x128xf32>,
    %c7_i32 = arith.constant 7 : i32
    %78 = arith.addi %0, %c7_i32 : i32
    %79 = arith.index_cast %78 : i32 to index
    %80 = memref.load %arg1[%79] : memref<16xi32, #tpu.memory_space<smem>>
    %81 = arith.index_cast %80 : i32 to index
    %c0_20 = arith.constant 0 : index
    %82 = vector.load %arg3[%81, %c0_20] : memref<64x128xf32, #tpu.memory_space<vmem>>, vector<1x128xf32>
    %83 = arith.index_cast %c7_i32 : i32 to index
    %c0_21 = arith.constant 0 : index
    %84 = vector.load %arg4[%83, %c0_21] : memref<8x1xf32, #tpu.memory_space<vmem>>, vector<1x1xf32>
    %85 = vector.broadcast %84 : vector<1x1xf32> to vector<1x128xf32>
    %86 = arith.mulf %82, %85 : vector<1x128xf32>
    %87 = arith.index_cast %c7_i32 : i32 to index
    %c0_22 = arith.constant 0 : index
    %88 = vector.load %arg5[%87, %c0_22] : memref<8x128xf32, #tpu.memory_space<vmem>>, vector<1x128xf32>
    tpu.vector_store %arg5[%87, %c0_22], %86 {strides = array<i32>} : memref<8x128xf32, #tpu.memory_space<vmem>>, vector<1x128xf32>,
    %c8_i32_23 = arith.constant 8 : i32
    return
  }
  func.func @transform_0(%arg0: i32, %arg1: memref<16xi32, #tpu.memory_space<smem>>, %arg2: memref<1xi32, #tpu.memory_space<smem>>) -> (i32, i32) {
    %c0_i32 = arith.constant 0 : i32
    %c0_i32_0 = arith.constant 0 : i32
    %c0_i32_1 = arith.constant 0 : i32
    return %c0_i32, %c0_i32_0 : i32, i32
  }
  func.func @transform_1(%arg0: i32, %arg1: memref<16xi32, #tpu.memory_space<smem>>, %arg2: memref<1xi32, #tpu.memory_space<smem>>) -> (i32, i32) {
    %c0_i32 = arith.constant 0 : i32
    %c0_i32_0 = arith.constant 0 : i32
    return %arg0, %c0_i32 : i32, i32
  }
  func.func @transform_2(%arg0: i32, %arg1: memref<16xi32, #tpu.memory_space<smem>>, %arg2: memref<1xi32, #tpu.memory_space<smem>>) -> (i32, i32) {
    %c0_i32 = arith.constant 0 : i32
    %c0_i32_0 = arith.constant 0 : i32
    return %arg0, %c0_i32 : i32, i32
  }
}

module attributes {stable_mosaic.version = 11 : i64} {
  func.func @_emb_kernel_vmem_table(%arg0: i32, %arg1: memref<16xi32, #tpu.memory_space<smem>>, %arg2: memref<1xi32, #tpu.memory_space<smem>>, %arg3: memref<64x128xf32, #tpu.memory_space<vmem>>, %arg4: memref<8x1xf32, #tpu.memory_space<vmem>>, %arg5: memref<8x128xf32, #tpu.memory_space<vmem>>) attributes {dimension_semantics = [#tpu.dimension_semantics<parallel>], iteration_bounds = array<i64: 2>, scalar_prefetch = 2 : i64, scratch_operands = 0 : i64, tpu.core_type = #tpu.core_type<tc>, window_params = [{pipeline_mode = #tpu.pipeline_mode<synchronous>, transform_indices = @transform_0, window_bounds = array<i64: 64, 128>}, {transform_indices = @transform_1, window_bounds = array<i64: 8, 1>}, {transform_indices = @transform_2, window_bounds = array<i64: 8, 128>}]} {
    %c8_i32 = arith.constant 8 : i32
    %0 = arith.muli %arg0, %c8_i32 : i32
    %c0_i32 = arith.constant 0 : i32
    %1 = arith.addi %0, %c0_i32 : i32
    %2 = arith.index_cast %1 : i32 to index
    %3 = memref.load %arg1[%2] : memref<16xi32, #tpu.memory_space<smem>>
    %4 = arith.index_cast %3 : i32 to index
    %c0 = arith.constant 0 : index
    %5 = vector.load %arg3[%4, %c0] : memref<64x128xf32, #tpu.memory_space<vmem>>, vector<1x128xf32>
    %6 = arith.index_cast %c0_i32 : i32 to index
    %c0_0 = arith.constant 0 : index
    %7 = vector.load %arg4[%6, %c0_0] : memref<8x1xf32, #tpu.memory_space<vmem>>, vector<1x1xf32>
    %8 = vector.broadcast %7 : vector<1x1xf32> to vector<1x128xf32>
    %9 = arith.mulf %5, %8 : vector<1x128xf32>
    %10 = arith.index_cast %c0_i32 : i32 to index
    %c0_1 = arith.constant 0 : index
    %11 = vector.load %arg5[%10, %c0_1] : memref<8x128xf32, #tpu.memory_space<vmem>>, vector<1x128xf32>
    tpu.vector_store %arg5[%10, %c0_1], %9 {strides = array<i32>} : memref<8x128xf32, #tpu.memory_space<vmem>>, vector<1x128xf32>,
    %c1_i32 = arith.constant 1 : i32
    %12 = arith.addi %0, %c1_i32 : i32
    %13 = arith.index_cast %12 : i32 to index
    %14 = memref.load %arg1[%13] : memref<16xi32, #tpu.memory_space<smem>>
    %15 = arith.index_cast %14 : i32 to index
    %c0_2 = arith.constant 0 : index
    %16 = vector.load %arg3[%15, %c0_2] : memref<64x128xf32, #tpu.memory_space<vmem>>, vector<1x128xf32>
    %17 = arith.index_cast %c1_i32 : i32 to index
    %c0_3 = arith.constant 0 : index
    %18 = vector.load %arg4[%17, %c0_3] : memref<8x1xf32, #tpu.memory_space<vmem>>, vector<1x1xf32>
    %19 = vector.broadcast %18 : vector<1x1xf32> to vector<1x128xf32>
    %20 = arith.mulf %16, %19 : vector<1x128xf32>
    %21 = arith.index_cast %c1_i32 : i32 to index
    %c0_4 = arith.constant 0 : index
    %22 = vector.load %arg5[%21, %c0_4] : memref<8x128xf32, #tpu.memory_space<vmem>>, vector<1x128xf32>
    tpu.vector_store %arg5[%21, %c0_4], %20 {strides = array<i32>} : memref<8x128xf32, #tpu.memory_space<vmem>>, vector<1x128xf32>,
    %c2_i32 = arith.constant 2 : i32
    %23 = arith.addi %0, %c2_i32 : i32
    %24 = arith.index_cast %23 : i32 to index
    %25 = memref.load %arg1[%24] : memref<16xi32, #tpu.memory_space<smem>>
    %26 = arith.index_cast %25 : i32 to index
    %c0_5 = arith.constant 0 : index
    %27 = vector.load %arg3[%26, %c0_5] : memref<64x128xf32, #tpu.memory_space<vmem>>, vector<1x128xf32>
    %28 = arith.index_cast %c2_i32 : i32 to index
    %c0_6 = arith.constant 0 : index
    %29 = vector.load %arg4[%28, %c0_6] : memref<8x1xf32, #tpu.memory_space<vmem>>, vector<1x1xf32>
    %30 = vector.broadcast %29 : vector<1x1xf32> to vector<1x128xf32>
    %31 = arith.mulf %27, %30 : vector<1x128xf32>
    %32 = arith.index_cast %c2_i32 : i32 to index
    %c0_7 = arith.constant 0 : index
    %33 = vector.load %arg5[%32, %c0_7] : memref<8x128xf32, #tpu.memory_space<vmem>>, vector<1x128xf32>
    tpu.vector_store %arg5[%32, %c0_7], %31 {strides = array<i32>} : memref<8x128xf32, #tpu.memory_space<vmem>>, vector<1x128xf32>,
    %c3_i32 = arith.constant 3 : i32
    %34 = arith.addi %0, %c3_i32 : i32
    %35 = arith.index_cast %34 : i32 to index
    %36 = memref.load %arg1[%35] : memref<16xi32, #tpu.memory_space<smem>>
    %37 = arith.index_cast %36 : i32 to index
    %c0_8 = arith.constant 0 : index
    %38 = vector.load %arg3[%37, %c0_8] : memref<64x128xf32, #tpu.memory_space<vmem>>, vector<1x128xf32>
    %39 = arith.index_cast %c3_i32 : i32 to index
    %c0_9 = arith.constant 0 : index
    %40 = vector.load %arg4[%39, %c0_9] : memref<8x1xf32, #tpu.memory_space<vmem>>, vector<1x1xf32>
    %41 = vector.broadcast %40 : vector<1x1xf32> to vector<1x128xf32>
    %42 = arith.mulf %38, %41 : vector<1x128xf32>
    %43 = arith.index_cast %c3_i32 : i32 to index
    %c0_10 = arith.constant 0 : index
    %44 = vector.load %arg5[%43, %c0_10] : memref<8x128xf32, #tpu.memory_space<vmem>>, vector<1x128xf32>
    tpu.vector_store %arg5[%43, %c0_10], %42 {strides = array<i32>} : memref<8x128xf32, #tpu.memory_space<vmem>>, vector<1x128xf32>,
    %c4_i32 = arith.constant 4 : i32
    %45 = arith.addi %0, %c4_i32 : i32
    %46 = arith.index_cast %45 : i32 to index
    %47 = memref.load %arg1[%46] : memref<16xi32, #tpu.memory_space<smem>>
    %48 = arith.index_cast %47 : i32 to index
    %c0_11 = arith.constant 0 : index
    %49 = vector.load %arg3[%48, %c0_11] : memref<64x128xf32, #tpu.memory_space<vmem>>, vector<1x128xf32>
    %50 = arith.index_cast %c4_i32 : i32 to index
    %c0_12 = arith.constant 0 : index
    %51 = vector.load %arg4[%50, %c0_12] : memref<8x1xf32, #tpu.memory_space<vmem>>, vector<1x1xf32>
    %52 = vector.broadcast %51 : vector<1x1xf32> to vector<1x128xf32>
    %53 = arith.mulf %49, %52 : vector<1x128xf32>
    %54 = arith.index_cast %c4_i32 : i32 to index
    %c0_13 = arith.constant 0 : index
    %55 = vector.load %arg5[%54, %c0_13] : memref<8x128xf32, #tpu.memory_space<vmem>>, vector<1x128xf32>
    tpu.vector_store %arg5[%54, %c0_13], %53 {strides = array<i32>} : memref<8x128xf32, #tpu.memory_space<vmem>>, vector<1x128xf32>,
    %c5_i32 = arith.constant 5 : i32
    %56 = arith.addi %0, %c5_i32 : i32
    %57 = arith.index_cast %56 : i32 to index
    %58 = memref.load %arg1[%57] : memref<16xi32, #tpu.memory_space<smem>>
    %59 = arith.index_cast %58 : i32 to index
    %c0_14 = arith.constant 0 : index
    %60 = vector.load %arg3[%59, %c0_14] : memref<64x128xf32, #tpu.memory_space<vmem>>, vector<1x128xf32>
    %61 = arith.index_cast %c5_i32 : i32 to index
    %c0_15 = arith.constant 0 : index
    %62 = vector.load %arg4[%61, %c0_15] : memref<8x1xf32, #tpu.memory_space<vmem>>, vector<1x1xf32>
    %63 = vector.broadcast %62 : vector<1x1xf32> to vector<1x128xf32>
    %64 = arith.mulf %60, %63 : vector<1x128xf32>
    %65 = arith.index_cast %c5_i32 : i32 to index
    %c0_16 = arith.constant 0 : index
    %66 = vector.load %arg5[%65, %c0_16] : memref<8x128xf32, #tpu.memory_space<vmem>>, vector<1x128xf32>
    tpu.vector_store %arg5[%65, %c0_16], %64 {strides = array<i32>} : memref<8x128xf32, #tpu.memory_space<vmem>>, vector<1x128xf32>,
    %c6_i32 = arith.constant 6 : i32
    %67 = arith.addi %0, %c6_i32 : i32
    %68 = arith.index_cast %67 : i32 to index
    %69 = memref.load %arg1[%68] : memref<16xi32, #tpu.memory_space<smem>>
    %70 = arith.index_cast %69 : i32 to index
    %c0_17 = arith.constant 0 : index
    %71 = vector.load %arg3[%70, %c0_17] : memref<64x128xf32, #tpu.memory_space<vmem>>, vector<1x128xf32>
    %72 = arith.index_cast %c6_i32 : i32 to index
    %c0_18 = arith.constant 0 : index
    %73 = vector.load %arg4[%72, %c0_18] : memref<8x1xf32, #tpu.memory_space<vmem>>, vector<1x1xf32>
    %74 = vector.broadcast %73 : vector<1x1xf32> to vector<1x128xf32>
    %75 = arith.mulf %71, %74 : vector<1x128xf32>
    %76 = arith.index_cast %c6_i32 : i32 to index
    %c0_19 = arith.constant 0 : index
    %77 = vector.load %arg5[%76, %c0_19] : memref<8x128xf32, #tpu.memory_space<vmem>>, vector<1x128xf32>
    tpu.vector_store %arg5[%76, %c0_19], %75 {strides = array<i32>} : memref<8x128xf32, #tpu.memory_space<vmem>>, vector<1x128xf32>,
    %c7_i32 = arith.constant 7 : i32
    %78 = arith.addi %0, %c7_i32 : i32
    %79 = arith.index_cast %78 : i32 to index
    %80 = memref.load %arg1[%79] : memref<16xi32, #tpu.memory_space<smem>>
    %81 = arith.index_cast %80 : i32 to index
    %c0_20 = arith.constant 0 : index
    %82 = vector.load %arg3[%81, %c0_20] : memref<64x128xf32, #tpu.memory_space<vmem>>, vector<1x128xf32>
    %83 = arith.index_cast %c7_i32 : i32 to index
    %c0_21 = arith.constant 0 : index
    %84 = vector.load %arg4[%83, %c0_21] : memref<8x1xf32, #tpu.memory_space<vmem>>, vector<1x1xf32>
    %85 = vector.broadcast %84 : vector<1x1xf32> to vector<1x128xf32>
    %86 = arith.mulf %82, %85 : vector<1x128xf32>
    %87 = arith.index_cast %c7_i32 : i32 to index
    %c0_22 = arith.constant 0 : index
    %88 = vector.load %arg5[%87, %c0_22] : memref<8x128xf32, #tpu.memory_space<vmem>>, vector<1x128xf32>
    tpu.vector_store %arg5[%87, %c0_22], %86 {strides = array<i32>} : memref<8x128xf32, #tpu.memory_space<vmem>>, vector<1x128xf32>,
    %c8_i32_23 = arith.constant 8 : i32
    return
  }
  func.func @transform_0(%arg0: i32, %arg1: memref<16xi32, #tpu.memory_space<smem>>, %arg2: memref<1xi32, #tpu.memory_space<smem>>) -> (i32, i32) {
    %c0_i32 = arith.constant 0 : i32
    %c0_i32_0 = arith.constant 0 : i32
    %c0_i32_1 = arith.constant 0 : i32
    return %c0_i32, %c0_i32_0 : i32, i32
  }
  func.func @transform_1(%arg0: i32, %arg1: memref<16xi32, #tpu.memory_space<smem>>, %arg2: memref<1xi32, #tpu.memory_space<smem>>) -> (i32, i32) {
    %c0_i32 = arith.constant 0 : i32
    %c0_i32_0 = arith.constant 0 : i32
    return %arg0, %c0_i32 : i32, i32
  }
  func.func @transform_2(%arg0: i32, %arg1: memref<16xi32, #tpu.memory_space<smem>>, %arg2: memref<1xi32, #tpu.memory_space<smem>>) -> (i32, i32) {
    %c0_i32 = arith.constant 0 : i32
    %c0_i32_0 = arith.constant 0 : i32
    return %arg0, %c0_i32 : i32, i32
  }
}

</mosaic_0001>

<llo_original>
// kernel: tpu_custom_call.1
$region0: #{tpu_custom_call.1}
  #allocation0 [shape = 'u32[]', space=smem, size = 0x4, offset = 0x4, fixed_abs, tag = 'smem constant byte address 0x4 - core index']
  #allocation1 [shape = 'u32[144,128]{1,0:T(1,128)}', space=vmem, size = 0x12000, scoped, tag = 'internal scratch']
  #allocation2 [shape = 's32[1]{0}', space=sflag, size = 0x4, scoped, tag = 'scoped memory for tpu_custom_call.1']
  #allocation3 [shape = 'u8[512]{0}', space=smem, size = 0x200, scoped, tag = 'prefetched SMEM operand 0']
  #allocation4 [shape = 's32[1]{0:T(128)S(6)}', space=smem, size = 0x200, scoped, tag = 'prefetched SMEM operand 1']
  %s0 = inlined_call_operand.vmem [shape: s32[16], index: 0, kind: input, shape index: {}]
  %s1 = inlined_call_operand.<no memory space> [shape: s32[1], index: 1, kind: input, shape index: {}]
  %s2 = inlined_call_operand.hbm [shape: f32[64,128], index: 2, kind: input, shape index: {}]
  %s3 = inlined_call_operand.vmem [shape: f32[16,1], index: 3, kind: input, shape index: {}]
  %s4 = inlined_call_operand.hbm [shape: f32[16,128], index: 4, kind: output, shape index: {}]
  %s5 = sld [smem:[#allocation0]]
  $region45: #{tpu_custom_call.1} parent=0
    _
  %s7 = ssub.s32 1, %s5
  %s8 = scalar_select 0, %s7, %s5
  %s9 = sshll.u32 %s0, 4
  %s10 = int_to_ptr.vmem [resolvable:$true] %s9
  %12 = dma.vmem_to_smem %s10, 16, [#allocation3], [#allocation2]
  %13 = sst [smem:[#allocation4]] %s1
  %14 = dma.done [#allocation2], 16
  %15 = sfence
  $region1: #{tpu_custom_call.1} parent=0
    #allocation5 [shape = 'u8[32768]{0}', space=vmem, size = 0x8000, scoped, tag = 'input window, operand 2, single buffered']
    #allocation6 [shape = 's32[2]{0}', space=sflag, size = 0x8, scoped, tag = 'scoped memory for tpu_custom_call.1']
    #allocation7 [shape = 's32[2]{0}', space=sflag, size = 0x8, scoped, tag = 'scoped memory for tpu_custom_call.1']
    #allocation8 [shape = 'u8[8192]{0}', space=vmem, size = 0x2000, scoped, tag = 'output window, operand 0']
    %16 = vsyncpa [#allocation6], 0
    %17 = vsyncpa [#allocation7], 0
    %s18 = scalar_lea.sflag [#allocation7], 1
    %19 = vsyncpa %s18, 0
    loop: start=0, step=1, limit=4
    $region2: #{tpu_custom_call.1} parent=1 // loop_pre_header
      _
    $region3: #{tpu_custom_call.1} parent=1 // loop_header
      %s21 = sphi 0, %s25
      %p22 = scmp.ge.s32.totalorder %s21, 4
      %s29 = sphi 0, %s29
      %s31 = sphi 0, %s29
      %s32 = sphi 0, %s31
      %s46 = sphi 0, %s32
      %s52 = sphi 0, %s54
      %s55 = sphi 0, %s52
      %s56 = sphi 0, %s55
      %s72 = sphi 0, %s56
      %s78 = sphi 0, %s80
      %s81 = sphi 0, %s78
      %s82 = sphi 0, %s81
      %s98 = sphi 0, %s82
    $region4: #{tpu_custom_call.1} parent=1 // loop_header_branch
      %24 = sbr.rel (%p22) target = $region8
    $region5: #{tpu_custom_call.1} parent=1 // loop_body
      %s26 = ssub.s32 %s21, 1
      %s27 = ssub.s32 %s21, 2
      %s28 = sadd.s32 %s21, 1
      %s30 = sadd.s32 %s29, 1
      %p33 = scmp.eq.s32.totalorder %s21, 1
      %p34 = scmp.ne.s32.totalorder %s29, %s31
      %p35 = scmp.eq.s32.totalorder %s21, 0
      %p36 = por %p34, %p35
      %p37 = scmp.ne.s32.totalorder %s29, %s31
      %p38 = scmp.eq.s32.totalorder %s26, 1
      %p39 = por %p37, %p38
      %p40 = scmp.ne.s32.totalorder %s31, %s32
      %p41 = scmp.eq.s32.totalorder %s26, 0
      %p42 = por %p40, %p41
      %p43 = scmp.ne.s32.totalorder %s31, %s32
      %p44 = scmp.eq.s32.totalorder %s27, 1
      %p45 = por %p43, %p44
      %p47 = scmp.ne.s32.totalorder %s32, %s46
      %p48 = scmp.eq.s32.totalorder %s27, 0
      %p49 = por %p47, %p48
      %s50 = ssub.s32 %s21, %s28
      %p51 = scmp.eq.s32.totalorder %s50, 0
      %s53 = sadd.s32 %s52, 1
      %s54 = scalar_select %p51, %s52, %s53
      %p57 = pneg %p51
      %p58 = scmp.eq.s32.totalorder %s21, 1
      %p59 = por %p57, %p58
      %p60 = scmp.ne.s32.totalorder %s52, %s55
      %p61 = scmp.eq.s32.totalorder %s21, 0
      %p62 = por %p60, %p61
      %p63 = scmp.ne.s32.totalorder %s52, %s55
      %p64 = scmp.eq.s32.totalorder %s26, 1
      %p65 = por %p63, %p64
      %p66 = scmp.ne.s32.totalorder %s55, %s56
      %p67 = scmp.eq.s32.totalorder %s26, 0
      %p68 = por %p66, %p67
      %p69 = scmp.ne.s32.totalorder %s55, %s56
      %p70 = scmp.eq.s32.totalorder %s27, 1
      %p71 = por %p69, %p70
      %p73 = scmp.ne.s32.totalorder %s56, %s72
      %p74 = scmp.eq.s32.totalorder %s27, 0
      %p75 = por %p73, %p74
      %s76 = ssub.s32 %s21, %s28
      %p77 = scmp.eq.s32.totalorder %s76, 0
      %s79 = sadd.s32 %s78, 1
      %s80 = scalar_select %p77, %s78, %s79
      %p83 = pneg %p77
      %p84 = scmp.eq.s32.totalorder %s21, 1
      %p85 = por %p83, %p84
      %p86 = scmp.ne.s32.totalorder %s78, %s81
      %p87 = scmp.eq.s32.totalorder %s21, 0
      %p88 = por %p86, %p87
      %p89 = scmp.ne.s32.totalorder %s78, %s81
      %p90 = scmp.eq.s32.totalorder %s26, 1
      %p91 = por %p89, %p90
      %p92 = scmp.ne.s32.totalorder %s81, %s82
      %p93 = scmp.eq.s32.totalorder %s26, 0
      %p94 = por %p92, %p93
      %p95 = scmp.ne.s32.totalorder %s81, %s82
      %p96 = scmp.eq.s32.totalorder %s27, 1
      %p97 = por %p95, %p96
      %p99 = scmp.ne.s32.totalorder %s82, %s98
      %p100 = scmp.eq.s32.totalorder %s27, 0
      %p101 = por %p99, %p100
      %p102 = scmp.le.s32.totalorder 1, %s21
      %p103 = scmp.lt.s32.totalorder %s21, 3
      %p104 = pnand %p102, %p103
      %p105 = pneg %p104
      // Predicated region
      $region9: #{tpu_custom_call.1} parent=5 // pred_check
        _
      $region10: #{tpu_custom_call.1} parent=5 // pred_check_branch
        %107 = sbr.rel (%p104) target = $region12
      $region11: #{tpu_custom_call.1} parent=5 // pred_region
        %s108 = ssub.s32 %s21, 1
        // Predicated region
        $region13: #{tpu_custom_call.1} parent=11 // pred_check
          %p109 = pneg %p42
        $region14: #{tpu_custom_call.1} parent=11 // pred_check_branch
          %111 = sbr.rel (%p109) target = $region16
        $region15: #{tpu_custom_call.1} parent=11 // pred_region
          %s113 = ssub.s32 1024, 1024
          %114 = vsyncadd [#allocation6], %s113
          %s115 = sshll.u32 [#allocation5], 4
          %s116 = int_to_ptr.vmem [resolvable:$true] %s115
          %121 = dma.hbm_to_vmem [thread:$0]  %s2, 1024, %s116, [#allocation6], 128, 128, 8
        $region16: #{tpu_custom_call.1} parent=11 // pred_fallthru
          _
      $region12: #{tpu_custom_call.1} parent=5 // pred_fallthru
        _
      %p122 = scmp.lt.s32.totalorder %s21, 2
      // Predicated region
      $region17: #{tpu_custom_call.1} parent=5 // pred_check
        %p123 = pneg %p122
      $region18: #{tpu_custom_call.1} parent=5 // pred_check_branch
        %125 = sbr.rel (%p123) target = $region20
      $region19: #{tpu_custom_call.1} parent=5 // pred_region
        // Predicated region
        $region21: #{tpu_custom_call.1} parent=19 // pred_check
          %p126 = pneg %p62
        $region22: #{tpu_custom_call.1} parent=19 // pred_check_branch
          %128 = sbr.rel (%p126) target = $region24
        $region23: #{tpu_custom_call.1} parent=19 // pred_region
          %p129 = scmp.lt.s32.totalorder %s21, 1
          %s130 = scalar_select %p129, %s21, 1
          %s131 = smul.addr %s130, 8
          %s132 = scalar_lea.vmem %s3, %s131
        $region24: #{tpu_custom_call.1} parent=19 // pred_fallthru
          _
      $region20: #{tpu_custom_call.1} parent=5 // pred_fallthru
        _
      %p133 = scmp.le.s32.totalorder 1, %s21
      %p134 = scmp.lt.s32.totalorder %s21, 3
      %p135 = pnand %p133, %p134
      %p136 = pneg %p135
      // Predicated region
      $region25: #{tpu_custom_call.1} parent=5 // pred_check
        _
      $region26: #{tpu_custom_call.1} parent=5 // pred_check_branch
        %138 = sbr.rel (%p135) target = $region28
      $region27: #{tpu_custom_call.1} parent=5 // pred_region
        %s139 = ssub.s32 %s21, 1
        // Predicated region
        $region29: #{tpu_custom_call.1} parent=27 // pred_check
          %p140 = pneg %p42
        $region30: #{tpu_custom_call.1} parent=27 // pred_check_branch
          %142 = sbr.rel (%p140) target = $region32
        $region31: #{tpu_custom_call.1} parent=27 // pred_region
          %143 = dma.done [#allocation6], 1024
        $region32: #{tpu_custom_call.1} parent=27 // pred_fallthru
          _
        %p144 = pneg %p42
        %p145 = pneg %p39
        %p146 = scmp.lt.s32.totalorder %s26, 1
        %s147 = scalar_select %p146, %s26, 1
        %s148 = smul.addr %s147, 8
        %s149 = scalar_lea.vmem %s3, %s148
        %p150 = pneg %p68
        %p151 = pneg %p65
        %p152 = pneg %p94
        %p153 = pneg %p91
        %s154 = sand.u32 %s81, 1
        %s155 = scalar_lea.sflag [#allocation7], %s154
        %s156 = sand.u32 %s81, 1
        %s157 = smul.addr %s156, 8
        %s158 = scalar_lea.vmem [#allocation8], %s157
        %p159 = scmp.lt.s32.totalorder %s26, 1
        %s160 = scalar_select %p159, %s26, 1
        %s161 = smul.addr %s160, 8
        %s162 = scalar_lea.vmem %s3, %s161
        %s163 = smul.u32 %s26, 8
        %s164 = sld [smem:[#allocation3 + %s163]]
        %s165 = scalar_lea.vmem [#allocation5], %s164
        %v166 = vld [vmem:[%s165] sm:$0x1]
        %v167 = vld [vmem:[%s162] sm:$0x1]
        %169 = vset.pattern.permute.xlu0 0
        %170 = vperm.xlu0 %169, %v167
        %v171 = vpop.permute.xlu0 %170
        %v173 = vmul.f32 %v166, %v171
        %174 = vst [vmem:[%s158] sm:$0x1] %v173
        %s175 = sadd.s32 %s163, 1
        %s176 = sld [smem:[#allocation3 + %s175]]
        %s177 = scalar_lea.vmem [#allocation5], %s176
        %v178 = vld [vmem:[%s177] sm:$0x1]
        %v179 = vld [vmem:[%s162 + $0x1] sm:$0x1]
        %181 = vset.pattern.permute.xlu0 0
        %182 = vperm.xlu0 %181, %v179
        %v183 = vpop.permute.xlu0 %182
        %v185 = vmul.f32 %v178, %v183
        %186 = vst [vmem:[%s158 + $0x1] sm:$0x1] %v185
        %s187 = sadd.s32 %s163, 2
        %s188 = sld [smem:[#allocation3 + %s187]]
        %s189 = scalar_lea.vmem [#allocation5], %s188
        %v190 = vld [vmem:[%s189] sm:$0x1]
        %v191 = vld [vmem:[%s162 + $0x2] sm:$0x1]
        %193 = vset.pattern.permute.xlu0 0
        %194 = vperm.xlu0 %193, %v191
        %v195 = vpop.permute.xlu0 %194
        %v197 = vmul.f32 %v190, %v195
        %198 = vst [vmem:[%s158 + $0x2] sm:$0x1] %v197
        %s199 = sadd.s32 %s163, 3
        %s200 = sld [smem:[#allocation3 + %s199]]
        %s201 = scalar_lea.vmem [#allocation5], %s200
        %v202 = vld [vmem:[%s201] sm:$0x1]
        %v203 = vld [vmem:[%s162 + $0x3] sm:$0x1]
        %205 = vset.pattern.permute.xlu0 0
        %206 = vperm.xlu0 %205, %v203
        %v207 = vpop.permute.xlu0 %206
        %v209 = vmul.f32 %v202, %v207
        %210 = vst [vmem:[%s158 + $0x3] sm:$0x1] %v209
        %s211 = sadd.s32 %s163, 4
        %s212 = sld [smem:[#allocation3 + %s211]]
        %s213 = scalar_lea.vmem [#allocation5], %s212
        %v214 = vld [vmem:[%s213] sm:$0x1]
        %v215 = vld [vmem:[%s162 + $0x4] sm:$0x1]
        %217 = vset.pattern.permute.xlu0 0
        %218 = vperm.xlu0 %217, %v215
        %v219 = vpop.permute.xlu0 %218
        %v221 = vmul.f32 %v214, %v219
        %222 = vst [vmem:[%s158 + $0x4] sm:$0x1] %v221
        %s223 = sadd.s32 %s163, 5
        %s224 = sld [smem:[#allocation3 + %s223]]
        %s225 = scalar_lea.vmem [#allocation5], %s224
        %v226 = vld [vmem:[%s225] sm:$0x1]
        %v227 = vld [vmem:[%s162 + $0x5] sm:$0x1]
        %229 = vset.pattern.permute.xlu0 0
        %230 = vperm.xlu0 %229, %v227
        %v231 = vpop.permute.xlu0 %230
        %v233 = vmul.f32 %v226, %v231
        %234 = vst [vmem:[%s158 + $0x5] sm:$0x1] %v233
        %s235 = sadd.s32 %s163, 6
        %s236 = sld [smem:[#allocation3 + %s235]]
        %s237 = scalar_lea.vmem [#allocation5], %s236
        %v238 = vld [vmem:[%s237] sm:$0x1]
        %v239 = vld [vmem:[%s162 + $0x6] sm:$0x1]
        %241 = vset.pattern.permute.xlu0 0
        %242 = vperm.xlu0 %241, %v239
        %v243 = vpop.permute.xlu0 %242
        %v245 = vmul.f32 %v238, %v243
        %246 = vst [vmem:[%s158 + $0x6] sm:$0x1] %v245
        %s247 = sadd.s32 %s163, 7
        %s248 = sld [smem:[#allocation3 + %s247]]
        %s249 = scalar_lea.vmem [#allocation5], %s248
        %v250 = vld [vmem:[%s249] sm:$0x1]
        %v251 = vld [vmem:[%s162 + $0x7] sm:$0x1]
        %253 = vset.pattern.permute.xlu0 0
        %254 = vperm.xlu0 %253, %v251
        %v255 = vpop.permute.xlu0 %254
        %v257 = vmul.f32 %v250, %v255
        %258 = vst [vmem:[%s158 + $0x7] sm:$0x1] %v257
        %s259 = sand.u32 %s81, 1
        %s260 = scalar_lea.sflag [#allocation7], %s259
        %s261 = sand.u32 %s81, 1
        %s262 = smul.addr %s261, 8
        %s263 = scalar_lea.vmem [#allocation8], %s262
        // Predicated region
        $region33: #{tpu_custom_call.1} parent=27 // pred_check
          %p264 = pneg %p91
        $region34: #{tpu_custom_call.1} parent=27 // pred_check_branch
          %266 = sbr.rel (%p264) target = $region36
        $region35: #{tpu_custom_call.1} parent=27 // pred_region
          %s268 = ssub.s32 128, 128
          %269 = vsyncadd %s260, %s268
          %s270 = smul.addr %s26, 128
          %s271 = scalar_lea.hbm %s4, %s270
          %s273 = sshll.u32 %s263, 4
          %s274 = int_to_ptr.vmem [resolvable:$true] %s273
          %276 = dma.vmem_to_hbm [thread:$0]  %s274, 128, %s271, %s260
        $region36: #{tpu_custom_call.1} parent=27 // pred_fallthru
          _
      $region28: #{tpu_custom_call.1} parent=5 // pred_fallthru
        _
      %p277 = scmp.le.s32.totalorder 2, %s21
      // Predicated region
      $region37: #{tpu_custom_call.1} parent=5 // pred_check
        %p278 = pneg %p277
      $region38: #{tpu_custom_call.1} parent=5 // pred_check_branch
        %280 = sbr.rel (%p278) target = $region40
      $region39: #{tpu_custom_call.1} parent=5 // pred_region
        %s281 = ssub.s32 %s21, 2
        // Predicated region
        $region41: #{tpu_custom_call.1} parent=39 // pred_check
          %p282 = pneg %p97
        $region42: #{tpu_custom_call.1} parent=39 // pred_check_branch
          %284 = sbr.rel (%p282) target = $region44
        $region43: #{tpu_custom_call.1} parent=39 // pred_region
          %s285 = sand.u32 %s82, 1
          %s286 = scalar_lea.sflag [#allocation7], %s285
          %s287 = sand.u32 %s82, 1
          %s288 = smul.addr %s287, 8
          %s289 = scalar_lea.vmem [#allocation8], %s288
          %290 = dma.done %s286, 128
        $region44: #{tpu_custom_call.1} parent=39 // pred_fallthru
          _
      $region40: #{tpu_custom_call.1} parent=5 // pred_fallthru
        _
    $region6: #{tpu_custom_call.1} parent=1 // loop_footer
      %s25 = sadd.s32 1, %s21
    $region7: #{tpu_custom_call.1} parent=1 // loop_footer_branch
      %20 = sbr.rel target = $region3
    $region8: #{tpu_custom_call.1} parent=1 // loop_exit
      _
    %291 = vsyncpa [#allocation6], 1
    %s292 = scalar_lea.sflag [#allocation6], 1
    %293 = vsyncpa %s292, 1
    %294 = vsyncpa [#allocation7], 1
    %s295 = scalar_lea.sflag [#allocation7], 1
    %296 = vsyncpa %s295, 1

// kernel: tpu_custom_call.1
$region0: #{tpu_custom_call.1}
  #allocation0 [shape = 'u32[]', space=smem, size = 0x4, offset = 0x4, fixed_abs, tag = 'smem constant byte address 0x4 - core index']
  #allocation1 [shape = 'u32[144,128]{1,0:T(1,128)}', space=vmem, size = 0x12000, scoped, tag = 'internal scratch']
  #allocation2 [shape = 's32[1]{0}', space=sflag, size = 0x4, scoped, tag = 'scoped memory for tpu_custom_call.1']
  #allocation3 [shape = 'u8[512]{0}', space=smem, size = 0x200, scoped, tag = 'prefetched SMEM operand 0']
  #allocation4 [shape = 's32[1]{0:T(128)S(6)}', space=smem, size = 0x200, scoped, tag = 'prefetched SMEM operand 1']
  %s0 = inlined_call_operand.vmem [shape: s32[16], index: 0, kind: input, shape index: {}]
  %s1 = inlined_call_operand.<no memory space> [shape: s32[1], index: 1, kind: input, shape index: {}]
  %s2 = inlined_call_operand.hbm [shape: f32[64,128], index: 2, kind: input, shape index: {}]
  %s3 = inlined_call_operand.vmem [shape: f32[16,1], index: 3, kind: input, shape index: {}]
  %s4 = inlined_call_operand.hbm [shape: f32[16,128], index: 4, kind: output, shape index: {}]
  %s5 = sld [smem:[#allocation0]]
  $region45: #{tpu_custom_call.1} parent=0
    _
  %s7 = ssub.s32 1, %s5
  %s8 = scalar_select 0, %s7, %s5
  %s9 = sshll.u32 %s0, 4
  %s10 = int_to_ptr.vmem [resolvable:$true] %s9
  %12 = dma.vmem_to_smem %s10, 16, [#allocation3], [#allocation2]
  %13 = sst [smem:[#allocation4]] %s1
  %14 = dma.done [#allocation2], 16
  %15 = sfence
  $region1: #{tpu_custom_call.1} parent=0
    #allocation5 [shape = 'u8[32768]{0}', space=vmem, size = 0x8000, scoped, tag = 'input window, operand 2, single buffered']
    #allocation6 [shape = 's32[2]{0}', space=sflag, size = 0x8, scoped, tag = 'scoped memory for tpu_custom_call.1']
    #allocation7 [shape = 's32[2]{0}', space=sflag, size = 0x8, scoped, tag = 'scoped memory for tpu_custom_call.1']
    #allocation8 [shape = 'u8[8192]{0}', space=vmem, size = 0x2000, scoped, tag = 'output window, operand 0']
    %16 = vsyncpa [#allocation6], 0
    %17 = vsyncpa [#allocation7], 0
    %s18 = scalar_lea.sflag [#allocation7], 1
    %19 = vsyncpa %s18, 0
    loop: start=0, step=1, limit=4
    $region2: #{tpu_custom_call.1} parent=1 // loop_pre_header
      _
    $region3: #{tpu_custom_call.1} parent=1 // loop_header
      %s21 = sphi 0, %s25
      %p22 = scmp.ge.s32.totalorder %s21, 4
      %s29 = sphi 0, %s29
      %s31 = sphi 0, %s29
      %s32 = sphi 0, %s31
      %s46 = sphi 0, %s32
      %s52 = sphi 0, %s54
      %s55 = sphi 0, %s52
      %s56 = sphi 0, %s55
      %s72 = sphi 0, %s56
      %s78 = sphi 0, %s80
      %s81 = sphi 0, %s78
      %s82 = sphi 0, %s81
      %s98 = sphi 0, %s82
    $region4: #{tpu_custom_call.1} parent=1 // loop_header_branch
      %24 = sbr.rel (%p22) target = $region8
    $region5: #{tpu_custom_call.1} parent=1 // loop_body
      %s26 = ssub.s32 %s21, 1
      %s27 = ssub.s32 %s21, 2
      %s28 = sadd.s32 %s21, 1
      %s30 = sadd.s32 %s29, 1
      %p33 = scmp.eq.s32.totalorder %s21, 1
      %p34 = scmp.ne.s32.totalorder %s29, %s31
      %p35 = scmp.eq.s32.totalorder %s21, 0
      %p36 = por %p34, %p35
      %p37 = scmp.ne.s32.totalorder %s29, %s31
      %p38 = scmp.eq.s32.totalorder %s26, 1
      %p39 = por %p37, %p38
      %p40 = scmp.ne.s32.totalorder %s31, %s32
      %p41 = scmp.eq.s32.totalorder %s26, 0
      %p42 = por %p40, %p41
      %p43 = scmp.ne.s32.totalorder %s31, %s32
      %p44 = scmp.eq.s32.totalorder %s27, 1
      %p45 = por %p43, %p44
      %p47 = scmp.ne.s32.totalorder %s32, %s46
      %p48 = scmp.eq.s32.totalorder %s27, 0
      %p49 = por %p47, %p48
      %s50 = ssub.s32 %s21, %s28
      %p51 = scmp.eq.s32.totalorder %s50, 0
      %s53 = sadd.s32 %s52, 1
      %s54 = scalar_select %p51, %s52, %s53
      %p57 = pneg %p51
      %p58 = scmp.eq.s32.totalorder %s21, 1
      %p59 = por %p57, %p58
      %p60 = scmp.ne.s32.totalorder %s52, %s55
      %p61 = scmp.eq.s32.totalorder %s21, 0
      %p62 = por %p60, %p61
      %p63 = scmp.ne.s32.totalorder %s52, %s55
      %p64 = scmp.eq.s32.totalorder %s26, 1
      %p65 = por %p63, %p64
      %p66 = scmp.ne.s32.totalorder %s55, %s56
      %p67 = scmp.eq.s32.totalorder %s26, 0
      %p68 = por %p66, %p67
      %p69 = scmp.ne.s32.totalorder %s55, %s56
      %p70 = scmp.eq.s32.totalorder %s27, 1
      %p71 = por %p69, %p70
      %p73 = scmp.ne.s32.totalorder %s56, %s72
      %p74 = scmp.eq.s32.totalorder %s27, 0
      %p75 = por %p73, %p74
      %s76 = ssub.s32 %s21, %s28
      %p77 = scmp.eq.s32.totalorder %s76, 0
      %s79 = sadd.s32 %s78, 1
      %s80 = scalar_select %p77, %s78, %s79
      %p83 = pneg %p77
      %p84 = scmp.eq.s32.totalorder %s21, 1
      %p85 = por %p83, %p84
      %p86 = scmp.ne.s32.totalorder %s78, %s81
      %p87 = scmp.eq.s32.totalorder %s21, 0
      %p88 = por %p86, %p87
      %p89 = scmp.ne.s32.totalorder %s78, %s81
      %p90 = scmp.eq.s32.totalorder %s26, 1
      %p91 = por %p89, %p90
      %p92 = scmp.ne.s32.totalorder %s81, %s82
      %p93 = scmp.eq.s32.totalorder %s26, 0
      %p94 = por %p92, %p93
      %p95 = scmp.ne.s32.totalorder %s81, %s82
      %p96 = scmp.eq.s32.totalorder %s27, 1
      %p97 = por %p95, %p96
      %p99 = scmp.ne.s32.totalorder %s82, %s98
      %p100 = scmp.eq.s32.totalorder %s27, 0
      %p101 = por %p99, %p100
      %p102 = scmp.le.s32.totalorder 1, %s21
      %p103 = scmp.lt.s32.totalorder %s21, 3
      %p104 = pnand %p102, %p103
      %p105 = pneg %p104
      // Predicated region
      $region9: #{tpu_custom_call.1} parent=5 // pred_check
        _
      $region10: #{tpu_custom_call.1} parent=5 // pred_check_branch
        %107 = sbr.rel (%p104) target = $region12
      $region11: #{tpu_custom_call.1} parent=5 // pred_region
        %s108 = ssub.s32 %s21, 1
        // Predicated region
        $region13: #{tpu_custom_call.1} parent=11 // pred_check
          %p109 = pneg %p42
        $region14: #{tpu_custom_call.1} parent=11 // pred_check_branch
          %111 = sbr.rel (%p109) target = $region16
        $region15: #{tpu_custom_call.1} parent=11 // pred_region
          %s113 = ssub.s32 1024, 1024
          %114 = vsyncadd [#allocation6], %s113
          %s115 = sshll.u32 [#allocation5], 4
          %s116 = int_to_ptr.vmem [resolvable:$true] %s115
          %121 = dma.hbm_to_vmem [thread:$0]  %s2, 1024, %s116, [#allocation6], 128, 128, 8
        $region16: #{tpu_custom_call.1} parent=11 // pred_fallthru
          _
      $region12: #{tpu_custom_call.1} parent=5 // pred_fallthru
        _
      %p122 = scmp.lt.s32.totalorder %s21, 2
      // Predicated region
      $region17: #{tpu_custom_call.1} parent=5 // pred_check
        %p123 = pneg %p122
      $region18: #{tpu_custom_call.1} parent=5 // pred_check_branch
        %125 = sbr.rel (%p123) target = $region20
      $region19: #{tpu_custom_call.1} parent=5 // pred_region
        // Predicated region
        $region21: #{tpu_custom_call.1} parent=19 // pred_check
          %p126 = pneg %p62
        $region22: #{tpu_custom_call.1} parent=19 // pred_check_branch
          %128 = sbr.rel (%p126) target = $region24
        $region23: #{tpu_custom_call.1} parent=19 // pred_region
          %p129 = scmp.lt.s32.totalorder %s21, 1
          %s130 = scalar_select %p129, %s21, 1
          %s131 = smul.addr %s130, 8
          %s132 = scalar_lea.vmem %s3, %s131
        $region24: #{tpu_custom_call.1} parent=19 // pred_fallthru
          _
      $region20: #{tpu_custom_call.1} parent=5 // pred_fallthru
        _
      %p133 = scmp.le.s32.totalorder 1, %s21
      %p134 = scmp.lt.s32.totalorder %s21, 3
      %p135 = pnand %p133, %p134
      %p136 = pneg %p135
      // Predicated region
      $region25: #{tpu_custom_call.1} parent=5 // pred_check
        _
      $region26: #{tpu_custom_call.1} parent=5 // pred_check_branch
        %138 = sbr.rel (%p135) target = $region28
      $region27: #{tpu_custom_call.1} parent=5 // pred_region
        %s139 = ssub.s32 %s21, 1
        // Predicated region
        $region29: #{tpu_custom_call.1} parent=27 // pred_check
          %p140 = pneg %p42
        $region30: #{tpu_custom_call.1} parent=27 // pred_check_branch
          %142 = sbr.rel (%p140) target = $region32
        $region31: #{tpu_custom_call.1} parent=27 // pred_region
          %143 = dma.done [#allocation6], 1024
        $region32: #{tpu_custom_call.1} parent=27 // pred_fallthru
          _
        %p144 = pneg %p42
        %p145 = pneg %p39
        %p146 = scmp.lt.s32.totalorder %s26, 1
        %s147 = scalar_select %p146, %s26, 1
        %s148 = smul.addr %s147, 8
        %s149 = scalar_lea.vmem %s3, %s148
        %p150 = pneg %p68
        %p151 = pneg %p65
        %p152 = pneg %p94
        %p153 = pneg %p91
        %s154 = sand.u32 %s81, 1
        %s155 = scalar_lea.sflag [#allocation7], %s154
        %s156 = sand.u32 %s81, 1
        %s157 = smul.addr %s156, 8
        %s158 = scalar_lea.vmem [#allocation8], %s157
        %p159 = scmp.lt.s32.totalorder %s26, 1
        %s160 = scalar_select %p159, %s26, 1
        %s161 = smul.addr %s160, 8
        %s162 = scalar_lea.vmem %s3, %s161
        %s163 = smul.u32 %s26, 8
        %s164 = sld [smem:[#allocation3 + %s163]]
        %s165 = scalar_lea.vmem [#allocation5], %s164
        %v166 = vld [vmem:[%s165] sm:$0x1]
        %v167 = vld [vmem:[%s162] sm:$0x1]
        %169 = vset.pattern.permute.xlu0 0
        %170 = vperm.xlu0 %169, %v167
        %v171 = vpop.permute.xlu0 %170
        %v173 = vmul.f32 %v166, %v171
        %174 = vst [vmem:[%s158] sm:$0x1] %v173
        %s175 = sadd.s32 %s163, 1
        %s176 = sld [smem:[#allocation3 + %s175]]
        %s177 = scalar_lea.vmem [#allocation5], %s176
        %v178 = vld [vmem:[%s177] sm:$0x1]
        %v179 = vld [vmem:[%s162 + $0x1] sm:$0x1]
        %181 = vset.pattern.permute.xlu0 0
        %182 = vperm.xlu0 %181, %v179
        %v183 = vpop.permute.xlu0 %182
        %v185 = vmul.f32 %v178, %v183
        %186 = vst [vmem:[%s158 + $0x1] sm:$0x1] %v185
        %s187 = sadd.s32 %s163, 2
        %s188 = sld [smem:[#allocation3 + %s187]]
        %s189 = scalar_lea.vmem [#allocation5], %s188
        %v190 = vld [vmem:[%s189] sm:$0x1]
        %v191 = vld [vmem:[%s162 + $0x2] sm:$0x1]
        %193 = vset.pattern.permute.xlu0 0
        %194 = vperm.xlu0 %193, %v191
        %v195 = vpop.permute.xlu0 %194
        %v197 = vmul.f32 %v190, %v195
        %198 = vst [vmem:[%s158 + $0x2] sm:$0x1] %v197
        %s199 = sadd.s32 %s163, 3
        %s200 = sld [smem:[#allocation3 + %s199]]
        %s201 = scalar_lea.vmem [#allocation5], %s200
        %v202 = vld [vmem:[%s201] sm:$0x1]
        %v203 = vld [vmem:[%s162 + $0x3] sm:$0x1]
        %205 = vset.pattern.permute.xlu0 0
        %206 = vperm.xlu0 %205, %v203
        %v207 = vpop.permute.xlu0 %206
        %v209 = vmul.f32 %v202, %v207
        %210 = vst [vmem:[%s158 + $0x3] sm:$0x1] %v209
        %s211 = sadd.s32 %s163, 4
        %s212 = sld [smem:[#allocation3 + %s211]]
        %s213 = scalar_lea.vmem [#allocation5], %s212
        %v214 = vld [vmem:[%s213] sm:$0x1]
        %v215 = vld [vmem:[%s162 + $0x4] sm:$0x1]
        %217 = vset.pattern.permute.xlu0 0
        %218 = vperm.xlu0 %217, %v215
        %v219 = vpop.permute.xlu0 %218
        %v221 = vmul.f32 %v214, %v219
        %222 = vst [vmem:[%s158 + $0x4] sm:$0x1] %v221
        %s223 = sadd.s32 %s163, 5
        %s224 = sld [smem:[#allocation3 + %s223]]
        %s225 = scalar_lea.vmem [#allocation5], %s224
        %v226 = vld [vmem:[%s225] sm:$0x1]
        %v227 = vld [vmem:[%s162 + $0x5] sm:$0x1]
        %229 = vset.pattern.permute.xlu0 0
        %230 = vperm.xlu0 %229, %v227
        %v231 = vpop.permute.xlu0 %230
        %v233 = vmul.f32 %v226, %v231
        %234 = vst [vmem:[%s158 + $0x5] sm:$0x1] %v233
        %s235 = sadd.s32 %s163, 6
        %s236 = sld [smem:[#allocation3 + %s235]]
        %s237 = scalar_lea.vmem [#allocation5], %s236
        %v238 = vld [vmem:[%s237] sm:$0x1]
        %v239 = vld [vmem:[%s162 + $0x6] sm:$0x1]
        %241 = vset.pattern.permute.xlu0 0
        %242 = vperm.xlu0 %241, %v239
        %v243 = vpop.permute.xlu0 %242
        %v245 = vmul.f32 %v238, %v243
        %246 = vst [vmem:[%s158 + $0x6] sm:$0x1] %v245
        %s247 = sadd.s32 %s163, 7
        %s248 = sld [smem:[#allocation3 + %s247]]
        %s249 = scalar_lea.vmem [#allocation5], %s248
        %v250 = vld [vmem:[%s249] sm:$0x1]
        %v251 = vld [vmem:[%s162 + $0x7] sm:$0x1]
        %253 = vset.pattern.permute.xlu0 0
        %254 = vperm.xlu0 %253, %v251
        %v255 = vpop.permute.xlu0 %254
        %v257 = vmul.f32 %v250, %v255
        %258 = vst [vmem:[%s158 + $0x7] sm:$0x1] %v257
        %s259 = sand.u32 %s81, 1
        %s260 = scalar_lea.sflag [#allocation7], %s259
        %s261 = sand.u32 %s81, 1
        %s262 = smul.addr %s261, 8
        %s263 = scalar_lea.vmem [#allocation8], %s262
        // Predicated region
        $region33: #{tpu_custom_call.1} parent=27 // pred_check
          %p264 = pneg %p91
        $region34: #{tpu_custom_call.1} parent=27 // pred_check_branch
          %266 = sbr.rel (%p264) target = $region36
        $region35: #{tpu_custom_call.1} parent=27 // pred_region
          %s268 = ssub.s32 128, 128
          %269 = vsyncadd %s260, %s268
          %s270 = smul.addr %s26, 128
          %s271 = scalar_lea.hbm %s4, %s270
          %s273 = sshll.u32 %s263, 4
          %s274 = int_to_ptr.vmem [resolvable:$true] %s273
          %276 = dma.vmem_to_hbm [thread:$0]  %s274, 128, %s271, %s260
        $region36: #{tpu_custom_call.1} parent=27 // pred_fallthru
          _
      $region28: #{tpu_custom_call.1} parent=5 // pred_fallthru
        _
      %p277 = scmp.le.s32.totalorder 2, %s21
      // Predicated region
      $region37: #{tpu_custom_call.1} parent=5 // pred_check
        %p278 = pneg %p277
      $region38: #{tpu_custom_call.1} parent=5 // pred_check_branch
        %280 = sbr.rel (%p278) target = $region40
      $region39: #{tpu_custom_call.1} parent=5 // pred_region
        %s281 = ssub.s32 %s21, 2
        // Predicated region
        $region41: #{tpu_custom_call.1} parent=39 // pred_check
          %p282 = pneg %p97
        $region42: #{tpu_custom_call.1} parent=39 // pred_check_branch
          %284 = sbr.rel (%p282) target = $region44
        $region43: #{tpu_custom_call.1} parent=39 // pred_region
          %s285 = sand.u32 %s82, 1
          %s286 = scalar_lea.sflag [#allocation7], %s285
          %s287 = sand.u32 %s82, 1
          %s288 = smul.addr %s287, 8
          %s289 = scalar_lea.vmem [#allocation8], %s288
          %290 = dma.done %s286, 128
        $region44: #{tpu_custom_call.1} parent=39 // pred_fallthru
          _
      $region40: #{tpu_custom_call.1} parent=5 // pred_fallthru
        _
    $region6: #{tpu_custom_call.1} parent=1 // loop_footer
      %s25 = sadd.s32 1, %s21
    $region7: #{tpu_custom_call.1} parent=1 // loop_footer_branch
      %20 = sbr.rel target = $region3
    $region8: #{tpu_custom_call.1} parent=1 // loop_exit
      _
    %291 = vsyncpa [#allocation6], 1
    %s292 = scalar_lea.sflag [#allocation6], 1
    %293 = vsyncpa %s292, 1
    %294 = vsyncpa [#allocation7], 1
    %s295 = scalar_lea.sflag [#allocation7], 1
    %296 = vsyncpa %s295, 1

</llo_original>
